<compile_context>
chip_gen: v6e
topology: v6e:2x2x1
jax: 0.10.0
libtpu: 0.0.40
codegen_flags: <defaults>
</compile_context>

<pallas_src>
import functools
import math

import jax
import jax.numpy as jnp
from jax import lax
from jax.experimental import pallas as pl
from jax.experimental.pallas import tpu as pltpu

LANES = 128
# ~2 MiB per input per pipeline buffer (2 inputs x 2 buffers ≈ 8 MiB resident).
_BYTES_PER_BUFFER = 2 * 1024 * 1024


def _ceil_div(a, b):
    return -(-a // b)


def _round_up(x, m):
    return _ceil_div(x, m) * m


def _iou_loss_kernel(p_ref, t_ref, out_ref, iand_acc, s_acc, *,
                     rows_valid, mask_tail):
    """Grid = (batch_block, row_chunk).  Blocks are (bt, chunk_rows, 128)."""
    k = pl.program_id(1)
    nk = pl.num_programs(1)

    p = p_ref[...].astype(jnp.float32)          # (bt, chunk_rows, 128)
    t = t_ref[...].astype(jnp.float32)

    if mask_tail:
        # The chunking overhangs the real row extent: zero the garbage rows the
        # overhanging DMA brought in before reducing (VALU has plenty of slack).
        chunk_rows = p.shape[1]
        row = lax.broadcasted_iota(jnp.int32, p.shape, 1) + k * chunk_rows
        keep = row < rows_valid
        p = jnp.where(keep, p, 0.0)
        t = jnp.where(keep, t, 0.0)

    # Two reductions instead of three: intersection and sum(pred + target);
    # the union is recovered as s - iand at finalize time.
    iand_part = jnp.sum(p * t, axis=1)          # (bt, 128) per-lane partials
    s_part = jnp.sum(p + t, axis=1)             # (bt, 128)

    @pl.when(k == 0)
    def _init():
        iand_acc[...] = jnp.zeros_like(iand_acc)
        s_acc[...] = jnp.zeros_like(s_acc)

    iand_acc[...] += iand_part
    s_acc[...] += s_part

    @pl.when(k == nk - 1)
    def _finalize():
        iand = jnp.sum(iand_acc[...], axis=-1, keepdims=True)   # (bt, 1)
        s = jnp.sum(s_acc[...], axis=-1, keepdims=True)         # (bt, 1)
        ior = s - iand
        iou1 = iand / (ior + 1e-5)
        loss = 1.0 - iou1                                       # (bt, 1)
        out_ref[...] = jnp.broadcast_to(loss, out_ref.shape)


def iou_loss(pred, target):
    """Pallas implementation of IoU_loss.forward (returns a scalar float32)."""
    assert pred.shape == target.shape
    if pred.dtype == jnp.bool_:
        pred = pred.astype(jnp.int8)
    if target.dtype == jnp.bool_:
        target = target.astype(jnp.int8)

    b = pred.shape[0]
    n = int(math.prod(pred.shape[1:]))

    p2 = pred.reshape(b, n)
    t2 = target.reshape(b, n)

    # Lane-dense (b, rows, 128) view.  Only if C*H*W is not a multiple of 128
    # do we pad (< 128 zeros per image, sum-safe); typical mask shapes are
    # already 128-aligned so this path is normally dead.
    # TODO(synk): this small pad still round-trips HBM through XLA's pad op; a
    # fully pad-free element-masked 2-D layout is possible but not worth it.
    rem = n % LANES
    if rem:
        p2 = jnp.pad(p2, ((0, 0), (0, LANES - rem)))
        t2 = jnp.pad(t2, ((0, 0), (0, LANES - rem)))
    rows = p2.shape[1] // LANES
    p3 = p2.reshape(b, rows, LANES)
    t3 = t2.reshape(b, rows, LANES)

    # dtype-aware tiling: sublane packing (8/16/32 for 4/2/1-byte dtypes) and a
    # per-input, per-buffer VMEM budget of ~_BYTES_PER_BUFFER.
    item_p = jnp.dtype(p3.dtype).itemsize
    item_t = jnp.dtype(t3.dtype).itemsize
    pack = 32 // min(item_p, item_t)            # lcm of the per-dtype packings
    rows_cap = max(
        pack,
        (_BYTES_PER_BUFFER // (LANES * max(item_p, item_t))) // pack * pack,
    )

    if rows <= rows_cap:
        # Single chunk: the block spans the full row extent, so there is no
        # alignment requirement, no overhang and no masking.
        num_chunks = 1
        chunk_rows = rows
    else:
        # Balanced chunks: overhang bounded by < `pack` rows per image.
        num_chunks = _ceil_div(rows, rows_cap)
        chunk_rows = _round_up(_ceil_div(rows, num_chunks), pack)
    mask_tail = (num_chunks * chunk_rows) != rows

    # Balanced batch blocking; guarantee >= 2 blocks whenever b >= 2 so both
    # v7x TensorCores get work (harmless on 1-TC v5e/v6e).
    if num_chunks > 1:
        bt = 1
    else:
        bt_max = max(1, min(b, rows_cap // max(chunk_rows, 1)))
        num_bblocks = _ceil_div(b, bt_max)
        bt = _ceil_div(b, num_bblocks)
        if b >= 2:
            bt = min(bt, _ceil_div(b, 2))
    num_bblocks = _ceil_div(b, bt)

    kernel = functools.partial(
        _iou_loss_kernel, rows_valid=rows, mask_tail=mask_tail)

    bytes_accessed = (p3.size * item_p + t3.size * item_t
                      + num_bblocks * bt * LANES * 4)
    cost = pl.CostEstimate(flops=4 * b * n, transcendentals=0,
                           bytes_accessed=bytes_accessed)

    per_image = pl.pallas_call(
        kernel,
        out_shape=jax.ShapeDtypeStruct((num_bblocks, bt, LANES), jnp.float32),
        grid=(num_bblocks, num_chunks),
        in_specs=[
            pl.BlockSpec((bt, chunk_rows, LANES), lambda i, k: (i, k, 0)),
            pl.BlockSpec((bt, chunk_rows, LANES), lambda i, k: (i, k, 0)),
        ],
        out_specs=pl.BlockSpec((1, bt, LANES), lambda i, k: (i, 0, 0)),
        scratch_shapes=[
            pltpu.VMEM((bt, LANES), jnp.float32),   # sum(p*t) per-lane partials
            pltpu.VMEM((bt, LANES), jnp.float32),   # sum(p+t) per-lane partials
        ],
        compiler_params=pltpu.CompilerParams(
            dimension_semantics=("parallel", "arbitrary"),
        ),
        cost_estimate=cost,
    )(p3, t3)

    # Per-image losses are broadcast across lanes; take lane 0 and drop any
    # batch-overhang (garbage) entries BEFORE the final mean.
    losses = per_image.reshape(num_bblocks * bt, LANES)[:b, 0]
    return jnp.sum(losses) / b


def _reference_iou_loss(pred, target):
    # Pure-JAX reference mirroring the PyTorch loop.
    pred = pred.astype(jnp.float32)
    target = target.astype(jnp.float32)
    b = pred.shape[0]
    total = 0.0
    for i in range(b):
        iand = jnp.sum(target[i] * pred[i])
        ior = jnp.sum(target[i]) + jnp.sum(pred[i]) - iand
        iou1 = iand / (ior + 1e-5)
        total = total + (1.0 - iou1)
    return total / b


if __name__ == "__main__":
    key = jax.random.PRNGKey(0)

    def make_inputs(k, shape, dtype):
        k1, k2 = jax.random.split(k)
        pred = jax.nn.sigmoid(jax.random.normal(k1, shape, dtype=jnp.float32))
        target = (jax.random.uniform(k2, shape) > 0.5).astype(jnp.float32)
        return pred.astype(dtype), target.astype(dtype)

    cases = [
        ((2, 4, 16, 16), jnp.float32),    # lane-aligned, single chunk (spec shape)
        ((3, 3, 10, 22), jnp.float32),    # ragged rows + ragged batch blocking
        ((2, 4, 16, 16), jnp.bfloat16),   # narrow native-dtype DMA path
    ]
    for shape, dtype in cases:
        key, sub = jax.random.split(key)
        pred, target = make_inputs(sub, shape, dtype)
        loss = jax.block_until_ready(iou_loss(pred, target))
        ref = jax.block_until_ready(_reference_iou_loss(pred, target))
        assert jnp.allclose(loss, ref, rtol=2e-4, atol=1e-5), (shape, dtype, loss, ref)

    print("KERNEL_OK")
</pallas_src>

<mosaic_0001>
module attributes {stable_mosaic.version = 11 : i64} {
  func.func @_iou_loss_kernel(%arg0: i32, %arg1: i32, %arg2: memref<1x8x128xf32, #tpu.memory_space<vmem>>, %arg3: memref<1x8x128xf32, #tpu.memory_space<vmem>>, %arg4: memref<1x1x128xf32, #tpu.memory_space<vmem>>, %arg5: memref<1x128xf32, #tpu.memory_space<vmem>>, %arg6: memref<1x128xf32, #tpu.memory_space<vmem>>) attributes {dimension_semantics = [#tpu.dimension_semantics<parallel>, #tpu.dimension_semantics<arbitrary>], iteration_bounds = array<i64: 2, 1>, scalar_prefetch = 0 : i64, scratch_operands = 2 : i64, tpu.core_type = #tpu.core_type<tc>, window_params = [{transform_indices = @transform_0, window_bounds = array<i64: 1, 8, 128>}, {transform_indices = @transform_1, window_bounds = array<i64: 1, 8, 128>}, {transform_indices = @transform_2, window_bounds = array<i64: 1, 1, 128>}]} {
    %c0 = arith.constant 0 : index
    %c0_0 = arith.constant 0 : index
    %c0_1 = arith.constant 0 : index
    %0 = vector.load %arg2[%c0, %c0_0, %c0_1] : memref<1x8x128xf32, #tpu.memory_space<vmem>>, vector<1x8x128xf32>
    %c0_2 = arith.constant 0 : index
    %c0_3 = arith.constant 0 : index
    %c0_4 = arith.constant 0 : index
    %1 = vector.load %arg3[%c0_2, %c0_3, %c0_4] : memref<1x8x128xf32, #tpu.memory_space<vmem>>, vector<1x8x128xf32>
    %2 = arith.mulf %0, %1 : vector<1x8x128xf32>
    %cst = arith.constant dense<0.000000e+00> : vector<1x128xf32>
    %3 = vector.multi_reduction <add>, %2, %cst [1] : vector<1x8x128xf32> to vector<1x128xf32>
    %4 = arith.addf %0, %1 : vector<1x8x128xf32>
    %cst_5 = arith.constant dense<0.000000e+00> : vector<1x128xf32>
    %5 = vector.multi_reduction <add>, %4, %cst_5 [1] : vector<1x8x128xf32> to vector<1x128xf32>
    %c0_i32 = arith.constant 0 : i32
    %6 = arith.cmpi eq, %arg1, %c0_i32 : i32
    %7 = arith.extui %6 : i1 to i32
    %c0_i32_6 = arith.constant 0 : i32
    %8 = arith.cmpi ne, %7, %c0_i32_6 : i32
    scf.if %8 {
      %cst_17 = arith.constant 0.000000e+00 : f32
      %18 = vector.broadcast %cst_17 : f32 to vector<1x128xf32>
      %c0_18 = arith.constant 0 : index
      %c0_19 = arith.constant 0 : index
      %19 = vector.load %arg5[%c0_18, %c0_19] : memref<1x128xf32, #tpu.memory_space<vmem>>, vector<1x128xf32>
      tpu.vector_store %arg5[%c0_18, %c0_19], %18 {strides = array<i32>} : memref<1x128xf32, #tpu.memory_space<vmem>>, vector<1x128xf32>,
      %cst_20 = arith.constant 0.000000e+00 : f32
      %20 = vector.broadcast %cst_20 : f32 to vector<1x128xf32>
      %c0_21 = arith.constant 0 : index
      %c0_22 = arith.constant 0 : index
      %21 = vector.load %arg6[%c0_21, %c0_22] : memref<1x128xf32, #tpu.memory_space<vmem>>, vector<1x128xf32>
      tpu.vector_store %arg6[%c0_21, %c0_22], %20 {strides = array<i32>} : memref<1x128xf32, #tpu.memory_space<vmem>>, vector<1x128xf32>,
    } else {
    }
    %c0_7 = arith.constant 0 : index
    %c0_8 = arith.constant 0 : index
    %9 = vector.load %arg5[%c0_7, %c0_8] : memref<1x128xf32, #tpu.memory_space<vmem>>, vector<1x128xf32>
    %10 = arith.addf %9, %3 : vector<1x128xf32>
    %c0_9 = arith.constant 0 : index
    %c0_10 = arith.constant 0 : index
    %11 = vector.load %arg5[%c0_9, %c0_10] : memref<1x128xf32, #tpu.memory_space<vmem>>, vector<1x128xf32>
    tpu.vector_store %arg5[%c0_9, %c0_10], %10 {strides = array<i32>} : memref<1x128xf32, #tpu.memory_space<vmem>>, vector<1x128xf32>,
    %c0_11 = arith.constant 0 : index
    %c0_12 = arith.constant 0 : index
    %12 = vector.load %arg6[%c0_11, %c0_12] : memref<1x128xf32, #tpu.memory_space<vmem>>, vector<1x128xf32>
    %13 = arith.addf %12, %5 : vector<1x128xf32>
    %c0_13 = arith.constant 0 : index
    %c0_14 = arith.constant 0 : index
    %14 = vector.load %arg6[%c0_13, %c0_14] : memref<1x128xf32, #tpu.memory_space<vmem>>, vector<1x128xf32>
    tpu.vector_store %arg6[%c0_13, %c0_14], %13 {strides = array<i32>} : memref<1x128xf32, #tpu.memory_space<vmem>>, vector<1x128xf32>,
    %c0_i32_15 = arith.constant 0 : i32
    %15 = arith.cmpi eq, %arg1, %c0_i32_15 : i32
    %16 = arith.extui %15 : i1 to i32
    %c0_i32_16 = arith.constant 0 : i32
    %17 = arith.cmpi ne, %16, %c0_i32_16 : i32
    scf.if %17 {
      %c0_17 = arith.constant 0 : index
      %c0_18 = arith.constant 0 : index
      %18 = vector.load %arg5[%c0_17, %c0_18] : memref<1x128xf32, #tpu.memory_space<vmem>>, vector<1x128xf32>
      %cst_19 = arith.constant dense<0.000000e+00> : vector<1xf32>
      %19 = vector.multi_reduction <add>, %18, %cst_19 [1] : vector<1x128xf32> to vector<1xf32>
      %20 = vector.shape_cast %19 : vector<1xf32> to vector<1x1xf32>
      %c0_20 = arith.constant 0 : index
      %c0_21 = arith.constant 0 : index
      %21 = vector.load %arg6[%c0_20, %c0_21] : memref<1x128xf32, #tpu.memory_space<vmem>>, vector<1x128xf32>
      %cst_22 = arith.constant dense<0.000000e+00> : vector<1xf32>
      %22 = vector.multi_reduction <add>, %21, %cst_22 [1] : vector<1x128xf32> to vector<1xf32>
      %23 = vector.shape_cast %22 : vector<1xf32> to vector<1x1xf32>
      %24 = arith.subf %23, %20 : vector<1x1xf32>
      %cst_23 = arith.constant 9.99999974E-6 : f32
      %25 = vector.broadcast %cst_23 : f32 to vector<1x1xf32>
      %26 = arith.addf %24, %25 : vector<1x1xf32>
      %27 = arith.divf %20, %26 : vector<1x1xf32>
      %cst_24 = arith.constant 1.000000e+00 : f32
      %28 = vector.broadcast %cst_24 : f32 to vector<1x1xf32>
      %29 = arith.subf %28, %27 : vector<1x1xf32>
      %30 = vector.shape_cast %29 : vector<1x1xf32> to vector<1x1x1xf32>
      %31 = vector.broadcast %30 : vector<1x1x1xf32> to vector<1x1x128xf32>
      %c0_25 = arith.constant 0 : index
      %c0_26 = arith.constant 0 : index
      %c0_27 = arith.constant 0 : index
      %32 = vector.load %arg4[%c0_25, %c0_26, %c0_27] : memref<1x1x128xf32, #tpu.memory_space<vmem>>, vector<1x1x128xf32>
      tpu.vector_store %arg4[%c0_25, %c0_26, %c0_27], %31 {strides = array<i32>} : memref<1x1x128xf32, #tpu.memory_space<vmem>>, vector<1x1x128xf32>,
    } else {
    }
    return
  }
  func.func @transform_0(%arg0: i32, %arg1: i32) -> (i32, i32, i32) {
    %c0_i32 = arith.constant 0 : i32
    %c0_i32_0 = arith.constant 0 : i32
    return %arg0, %arg1, %c0_i32 : i32, i32, i32
  }
  func.func @transform_1(%arg0: i32, %arg1: i32) -> (i32, i32, i32) {
    %c0_i32 = arith.constant 0 : i32
    %c0_i32_0 = arith.constant 0 : i32
    return %arg0, %arg1, %c0_i32 : i32, i32, i32
  }
  func.func @transform_2(%arg0: i32, %arg1: i32) -> (i32, i32, i32) {
    %c0_i32 = arith.constant 0 : i32
    %c0_i32_0 = arith.constant 0 : i32
    %c0_i32_1 = arith.constant 0 : i32
    return %arg0, %c0_i32, %c0_i32_0 : i32, i32, i32
  }
}

</mosaic_0001>

<llo_original>
// kernel: tpu_custom_call.1
$region0: #{tpu_custom_call.1}
  #allocation0 [shape = 'u32[]', space=smem, size = 0x4, offset = 0x4, fixed_abs, tag = 'smem constant byte address 0x4 - core index']
  #allocation1 [shape = 'u32[144,128]{1,0:T(1,128)}', space=vmem, size = 0x12000, scoped, tag = 'internal scratch']
  #allocation2 [shape = 'f32[1,128]{1,0:T(1,128)}', space=vmem, size = 0x200, scoped, tag = 'scratch operand']
  #allocation3 [shape = 'f32[1,128]{1,0:T(1,128)}', space=vmem, size = 0x200, scoped, tag = 'scratch operand']
  %s0 = inlined_call_operand.hbm [shape: f32[2,8,128], index: 0, kind: input, shape index: {}]
  %s1 = inlined_call_operand.hbm [shape: f32[2,8,128], index: 1, kind: input, shape index: {}]
  %s2 = inlined_call_operand.hbm [shape: f32[2,1,128], index: 2, kind: output, shape index: {}]
  %s3 = sld [smem:[#allocation0]]
  $region57: #{tpu_custom_call.1} parent=0
    _
  %s5 = ssub.s32 1, %s3
  %s6 = scalar_select 0, %s5, %s3
  $region1: #{tpu_custom_call.1} parent=0
    #allocation4 [shape = 'u8[8192]{0}', space=vmem, size = 0x2000, scoped, tag = 'input window, operand 0']
    #allocation5 [shape = 's32[2]{0}', space=sflag, size = 0x8, scoped, tag = 'scoped memory for tpu_custom_call.1']
    #allocation6 [shape = 's32[2]{0}', space=sflag, size = 0x8, scoped, tag = 'scoped memory for tpu_custom_call.1']
    #allocation7 [shape = 'u8[8192]{0}', space=vmem, size = 0x2000, scoped, tag = 'input window, operand 1']
    #allocation8 [shape = 's32[2]{0}', space=sflag, size = 0x8, scoped, tag = 'scoped memory for tpu_custom_call.1']
    #allocation9 [shape = 'u8[1024]{0}', space=vmem, size = 0x400, scoped, tag = 'output window, operand 0']
    %7 = vsyncpa [#allocation5], 0
    %s8 = scalar_lea.sflag [#allocation5], 1
    %9 = vsyncpa %s8, 0
    %10 = vsyncpa [#allocation8], 0
    %s11 = scalar_lea.sflag [#allocation8], 1
    %12 = vsyncpa %s11, 0
    %13 = vsyncpa [#allocation6], 0
    %s14 = scalar_lea.sflag [#allocation6], 1
    %15 = vsyncpa %s14, 0
    loop: start=0, step=1, limit=4
    $region2: #{tpu_custom_call.1} parent=1 // loop_pre_header
      _
    $region3: #{tpu_custom_call.1} parent=1 // loop_header
      %s17 = sphi 0, %s21
      %p18 = scmp.ge.s32.totalorder %s17, 4
      %s24 = sphi 0, %s36
      %s25 = sphi 0, %s32
      %s26 = sphi 0, %s24
      %s27 = sphi 0, %s25
      %s28 = sphi 0, %s26
      %s29 = sphi 0, %s27
      %s41 = sphi 0, %s43
      %s44 = sphi 0, %s41
      %s45 = sphi 0, %s44
      %s61 = sphi 0, %s45
      %s69 = sphi 0, %s71
      %s72 = sphi 0, %s69
      %s73 = sphi 0, %s72
      %s89 = sphi 0, %s73
      %s95 = sphi 0, %s97
      %s98 = sphi 0, %s95
      %s99 = sphi 0, %s98
      %s115 = sphi 0, %s99
    $region4: #{tpu_custom_call.1} parent=1 // loop_header_branch
      %20 = sbr.rel (%p18) target = $region8
    $region5: #{tpu_custom_call.1} parent=1 // loop_body
      %s22 = ssub.s32 %s17, 1
      %s23 = ssub.s32 %s17, 2
      %s30 = sadd.s32 1, %s25
      %p31 = scmp.ge.s32.totalorder %s30, 1
      %s32 = scalar_select %p31, 0, %s30
      %s33 = sadd.s32 1, %s24
      %s34 = scalar_select %p31, %s33, %s24
      %p35 = scmp.ge.s32.totalorder %s34, 2
      %s36 = scalar_select %p35, 0, %s34
      %s37 = ssub.s32 %s24, %s36
      %s38 = ssub.s32 %s25, %s32
      %s39 = sor.u32 %s37, %s38
      %p40 = scmp.eq.s32.totalorder %s39, 0
      %s42 = sadd.s32 %s41, 1
      %s43 = scalar_select %p40, %s41, %s42
      %p46 = pneg %p40
      %p47 = scmp.eq.s32.totalorder %s17, 1
      %p48 = por %p46, %p47
      %p49 = scmp.ne.s32.totalorder %s41, %s44
      %p50 = scmp.eq.s32.totalorder %s17, 0
      %p51 = por %p49, %p50
      %p52 = scmp.ne.s32.totalorder %s41, %s44
      %p53 = scmp.eq.s32.totalorder %s22, 1
      %p54 = por %p52, %p53
      %p55 = scmp.ne.s32.totalorder %s44, %s45
      %p56 = scmp.eq.s32.totalorder %s22, 0
      %p57 = por %p55, %p56
      %p58 = scmp.ne.s32.totalorder %s44, %s45
      %p59 = scmp.eq.s32.totalorder %s23, 1
      %p60 = por %p58, %p59
      %p62 = scmp.ne.s32.totalorder %s45, %s61
      %p63 = scmp.eq.s32.totalorder %s23, 0
      %p64 = por %p62, %p63
      %s65 = ssub.s32 %s24, %s36
      %s66 = ssub.s32 %s25, %s32
      %s67 = sor.u32 %s65, %s66
      %p68 = scmp.eq.s32.totalorder %s67, 0
      %s70 = sadd.s32 %s69, 1
      %s71 = scalar_select %p68, %s69, %s70
      %p74 = pneg %p68
      %p75 = scmp.eq.s32.totalorder %s17, 1
      %p76 = por %p74, %p75
      %p77 = scmp.ne.s32.totalorder %s69, %s72
      %p78 = scmp.eq.s32.totalorder %s17, 0
      %p79 = por %p77, %p78
      %p80 = scmp.ne.s32.totalorder %s69, %s72
      %p81 = scmp.eq.s32.totalorder %s22, 1
      %p82 = por %p80, %p81
      %p83 = scmp.ne.s32.totalorder %s72, %s73
      %p84 = scmp.eq.s32.totalorder %s22, 0
      %p85 = por %p83, %p84
      %p86 = scmp.ne.s32.totalorder %s72, %s73
      %p87 = scmp.eq.s32.totalorder %s23, 1
      %p88 = por %p86, %p87
      %p90 = scmp.ne.s32.totalorder %s73, %s89
      %p91 = scmp.eq.s32.totalorder %s23, 0
      %p92 = por %p90, %p91
      %s93 = ssub.s32 %s24, %s36
      %p94 = scmp.eq.s32.totalorder %s93, 0
      %s96 = sadd.s32 %s95, 1
      %s97 = scalar_select %p94, %s95, %s96
      %p100 = pneg %p94
      %p101 = scmp.eq.s32.totalorder %s17, 1
      %p102 = por %p100, %p101
      %p103 = scmp.ne.s32.totalorder %s95, %s98
      %p104 = scmp.eq.s32.totalorder %s17, 0
      %p105 = por %p103, %p104
      %p106 = scmp.ne.s32.totalorder %s95, %s98
      %p107 = scmp.eq.s32.totalorder %s22, 1
      %p108 = por %p106, %p107
      %p109 = scmp.ne.s32.totalorder %s98, %s99
      %p110 = scmp.eq.s32.totalorder %s22, 0
      %p111 = por %p109, %p110
      %p112 = scmp.ne.s32.totalorder %s98, %s99
      %p113 = scmp.eq.s32.totalorder %s23, 1
      %p114 = por %p112, %p113
      %p116 = scmp.ne.s32.totalorder %s99, %s115
      %p117 = scmp.eq.s32.totalorder %s23, 0
      %p118 = por %p116, %p117
      %p119 = scmp.le.s32.totalorder 1, %s17
      %p120 = scmp.lt.s32.totalorder %s17, 3
      %p121 = pnand %p119, %p120
      %p122 = pneg %p121
      // Predicated region
      $region9: #{tpu_custom_call.1} parent=5 // pred_check
        _
      $region10: #{tpu_custom_call.1} parent=5 // pred_check_branch
        %124 = sbr.rel (%p121) target = $region12
      $region11: #{tpu_custom_call.1} parent=5 // pred_region
        %s125 = ssub.s32 %s17, 1
      $region12: #{tpu_custom_call.1} parent=5 // pred_fallthru
        _
      %p126 = scmp.lt.s32.totalorder %s17, 2
      // Predicated region
      $region13: #{tpu_custom_call.1} parent=5 // pred_check
        %p127 = pneg %p126
      $region14: #{tpu_custom_call.1} parent=5 // pred_check_branch
        %129 = sbr.rel (%p127) target = $region16
      $region15: #{tpu_custom_call.1} parent=5 // pred_region
        // Predicated region
        $region17: #{tpu_custom_call.1} parent=15 // pred_check
          %p130 = pneg %p51
        $region18: #{tpu_custom_call.1} parent=15 // pred_check_branch
          %132 = sbr.rel (%p130) target = $region20
        $region19: #{tpu_custom_call.1} parent=15 // pred_region
          %s133 = sand.u32 %s41, 1
          %s134 = scalar_lea.sflag [#allocation5], %s133
          %s135 = sand.u32 %s41, 1
          %s136 = smul.addr %s135, 8
          %s137 = scalar_lea.vmem [#allocation4], %s136
          %s139 = ssub.s32 128, 128
          %140 = vsyncadd %s134, %s139
          %s141 = sadd.s32 %s25, %s24
          %s142 = smul.addr %s141, 128
          %s143 = scalar_lea.hbm %s0, %s142
          %s145 = sshll.u32 %s137, 4
          %s146 = int_to_ptr.vmem [resolvable:$true] %s145
          %148 = dma.hbm_to_vmem [thread:$0]  %s143, 128, %s146, %s134
        $region20: #{tpu_custom_call.1} parent=15 // pred_fallthru
          _
        // Predicated region
        $region21: #{tpu_custom_call.1} parent=15 // pred_check
          %p149 = pneg %p79
        $region22: #{tpu_custom_call.1} parent=15 // pred_check_branch
          %151 = sbr.rel (%p149) target = $region24
        $region23: #{tpu_custom_call.1} parent=15 // pred_region
          %s152 = sand.u32 %s69, 1
          %s153 = scalar_lea.sflag [#allocation8], %s152
          %s154 = sand.u32 %s69, 1
          %s155 = smul.addr %s154, 8
          %s156 = scalar_lea.vmem [#allocation7], %s155
          %s158 = ssub.s32 128, 128
          %159 = vsyncadd %s153, %s158
          %s160 = sadd.s32 %s25, %s24
          %s161 = smul.addr %s160, 128
          %s162 = scalar_lea.hbm %s1, %s161
          %s164 = sshll.u32 %s156, 4
          %s165 = int_to_ptr.vmem [resolvable:$true] %s164
          %167 = dma.hbm_to_vmem [thread:$0]  %s162, 128, %s165, %s153
        $region24: #{tpu_custom_call.1} parent=15 // pred_fallthru
          _
      $region16: #{tpu_custom_call.1} parent=5 // pred_fallthru
        _
      %p168 = scmp.le.s32.totalorder 1, %s17
      %p169 = scmp.lt.s32.totalorder %s17, 3
      %p170 = pnand %p168, %p169
      %p171 = pneg %p170
      // Predicated region
      $region25: #{tpu_custom_call.1} parent=5 // pred_check
        _
      $region26: #{tpu_custom_call.1} parent=5 // pred_check_branch
        %173 = sbr.rel (%p170) target = $region28
      $region27: #{tpu_custom_call.1} parent=5 // pred_region
        %s174 = ssub.s32 %s17, 1
        %s175 = sand.u32 %s44, 1
        %s176 = scalar_lea.sflag [#allocation5], %s175
        %s177 = sand.u32 %s44, 1
        %s178 = smul.addr %s177, 8
        %s179 = scalar_lea.vmem [#allocation4], %s178
        // Predicated region
        $region29: #{tpu_custom_call.1} parent=27 // pred_check
          %p180 = pneg %p57
        $region30: #{tpu_custom_call.1} parent=27 // pred_check_branch
          %182 = sbr.rel (%p180) target = $region32
        $region31: #{tpu_custom_call.1} parent=27 // pred_region
          %183 = dma.done %s176, 128
        $region32: #{tpu_custom_call.1} parent=27 // pred_fallthru
          _
        %s184 = sand.u32 %s72, 1
        %s185 = scalar_lea.sflag [#allocation8], %s184
        %s186 = sand.u32 %s72, 1
        %s187 = smul.addr %s186, 8
        %s188 = scalar_lea.vmem [#allocation7], %s187
        // Predicated region
        $region33: #{tpu_custom_call.1} parent=27 // pred_check
          %p189 = pneg %p85
        $region34: #{tpu_custom_call.1} parent=27 // pred_check_branch
          %191 = sbr.rel (%p189) target = $region36
        $region35: #{tpu_custom_call.1} parent=27 // pred_region
          %192 = dma.done %s185, 128
        $region36: #{tpu_custom_call.1} parent=27 // pred_fallthru
          _
        %s193 = sand.u32 %s44, 1
        %s194 = scalar_lea.sflag [#allocation5], %s193
        %s195 = sand.u32 %s44, 1
        %s196 = smul.addr %s195, 8
        %s197 = scalar_lea.vmem [#allocation4], %s196
        %p198 = pneg %p57
        %p199 = pneg %p54
        %s200 = sand.u32 %s72, 1
        %s201 = scalar_lea.sflag [#allocation8], %s200
        %s202 = sand.u32 %s72, 1
        %s203 = smul.addr %s202, 8
        %s204 = scalar_lea.vmem [#allocation7], %s203
        %p205 = pneg %p85
        %p206 = pneg %p82
        %p207 = pneg %p111
        %p208 = pneg %p108
        %s209 = sand.u32 %s98, 1
        %s210 = scalar_lea.sflag [#allocation6], %s209
        %s211 = sand.u32 %s98, 1
        %s212 = scalar_lea.vmem [#allocation9], %s211
        %v213 = vld [vmem:[%s179] sm:$0xff]
        %v214 = vld [vmem:[%s188] sm:$0xff]
        %v215 = vmul.f32 %v213, %v214
        %v216 = vrot.slane %v215, 4
        %v217 = vadd.f32 %v215, %v216
        %v218 = vrot.slane %v217, 2
        %v219 = vadd.f32 %v217, %v218
        %v220 = vrot.slane %v219, 1
        %v221 = vadd.f32 %v219, %v220
        %v222 = vadd.f32 %v213, %v214
        %v223 = vrot.slane %v222, 4
        %v224 = vadd.f32 %v222, %v223
        %v225 = vrot.slane %v224, 2
        %v226 = vadd.f32 %v224, %v225
        %v227 = vrot.slane %v226, 1
        %v228 = vadd.f32 %v226, %v227
        %p229 = scmp.eq.s32.totalorder %s27, 0
        // Predicated region
        $region37: #{tpu_custom_call.1} parent=27 // pred_check
          %p230 = pneg %p229
        $region38: #{tpu_custom_call.1} parent=27 // pred_check_branch
          %232 = sbr.rel (%p230) target = $region40
        $region39: #{tpu_custom_call.1} parent=27 // pred_region
          %233 = vst [vmem:[#allocation2] sm:$0x1] 0.0
          %234 = vst [vmem:[#allocation3] sm:$0x1] 0.0
        $region40: #{tpu_custom_call.1} parent=27 // pred_fallthru
          _
        %v235 = vld [vmem:[#allocation2] sm:$0x1]
        %v236 = vadd.f32 %v235, %v221
        %237 = vst [vmem:[#allocation2] sm:$0x1] %v236
        %v238 = vld [vmem:[#allocation3] sm:$0x1]
        %v239 = vadd.f32 %v238, %v228
        %240 = vst [vmem:[#allocation3] sm:$0x1] %v239
        // Predicated region
        $region41: #{tpu_custom_call.1} parent=27 // pred_check
          %p241 = pneg %p229
        $region42: #{tpu_custom_call.1} parent=27 // pred_check_branch
          %243 = sbr.rel (%p241) target = $region44
        $region43: #{tpu_custom_call.1} parent=27 // pred_region
          %v244 = vld [vmem:[#allocation2] sm:$0x1]
          %vm245 = vcmask 1040384
          %v246 = vsel %vm245, %v244, 0.0
          %247 = vadd.xlane.f32.xlu0 %v246
          %v248 = vpop.xlane.xlu0 %247
          %v249 = vld [vmem:[#allocation3] sm:$0x1]
          %v250 = vsel %vm245, %v249, 0.0
          %251 = vadd.xlane.f32.xlu0 %v250
          %v252 = vpop.xlane.xlu0 %251
          %v253 = vsub.f32 %v252, %v248
          %v254 = vadd.f32 %v253, 1e-05
          %v255 = vrcp.pop %v254
          %v256 = vmul.f32 %v248, %v255
          %v257 = vsub.f32 1.0, %v256
          %258 = vst [vmem:[%s212] sm:$0x1] %v257
        $region44: #{tpu_custom_call.1} parent=27 // pred_fallthru
          _
        %s259 = sand.u32 %s98, 1
        %s260 = scalar_lea.sflag [#allocation6], %s259
        %s261 = sand.u32 %s98, 1
        %s262 = scalar_lea.vmem [#allocation9], %s261
        // Predicated region
        $region45: #{tpu_custom_call.1} parent=27 // pred_check
          %p263 = pneg %p108
        $region46: #{tpu_custom_call.1} parent=27 // pred_check_branch
          %265 = sbr.rel (%p263) target = $region48
        $region47: #{tpu_custom_call.1} parent=27 // pred_region
          %s267 = ssub.s32 16, 16
          %268 = vsyncadd %s260, %s267
          %s269 = smul.addr %s26, 16
          %s270 = scalar_lea.hbm %s2, %s269
          %s272 = sshll.u32 %s262, 4
          %s273 = int_to_ptr.vmem [resolvable:$true] %s272
          %275 = dma.vmem_to_hbm [thread:$0]  %s273, 16, %s270, %s260
        $region48: #{tpu_custom_call.1} parent=27 // pred_fallthru
          _
      $region28: #{tpu_custom_call.1} parent=5 // pred_fallthru
        _
      %p276 = scmp.le.s32.totalorder 2, %s17
      // Predicated region
      $region49: #{tpu_custom_call.1} parent=5 // pred_check
        %p277 = pneg %p276
      $region50: #{tpu_custom_call.1} parent=5 // pred_check_branch
        %279 = sbr.rel (%p277) target = $region52
      $region51: #{tpu_custom_call.1} parent=5 // pred_region
        %s280 = ssub.s32 %s17, 2
        // Predicated region
        $region53: #{tpu_custom_call.1} parent=51 // pred_check
          %p281 = pneg %p114
        $region54: #{tpu_custom_call.1} parent=51 // pred_check_branch
          %283 = sbr.rel (%p281) target = $region56
        $region55: #{tpu_custom_call.1} parent=51 // pred_region
          %s284 = sand.u32 %s99, 1
          %s285 = scalar_lea.sflag [#allocation6], %s284
          %s286 = sand.u32 %s99, 1
          %s287 = scalar_lea.vmem [#allocation9], %s286
          %288 = dma.done %s285, 16
        $region56: #{tpu_custom_call.1} parent=51 // pred_fallthru
          _
      $region52: #{tpu_custom_call.1} parent=5 // pred_fallthru
        _
    $region6: #{tpu_custom_call.1} parent=1 // loop_footer
      %s21 = sadd.s32 1, %s17
    $region7: #{tpu_custom_call.1} parent=1 // loop_footer_branch
      %16 = sbr.rel target = $region3
    $region8: #{tpu_custom_call.1} parent=1 // loop_exit
      _
    %289 = vsyncpa [#allocation5], 1
    %s290 = scalar_lea.sflag [#allocation5], 1
    %291 = vsyncpa %s290, 1
    %292 = vsyncpa [#allocation8], 1
    %s293 = scalar_lea.sflag [#allocation8], 1
    %294 = vsyncpa %s293, 1
    %295 = vsyncpa [#allocation6], 1
    %s296 = scalar_lea.sflag [#allocation6], 1
    %297 = vsyncpa %s296, 1

</llo_original>
